<compile_context>
chip_gen: v5e
topology: v5e:2x2
jax: 0.10.0
libtpu: 0.0.40
codegen_flags: <defaults>
</compile_context>

<pallas_src>
import functools
import math

import jax
import jax.numpy as jnp
from jax.experimental import pallas as pl
from jax.experimental.pallas import tpu as pltpu


def _round_up(x, m):
    return ((x + m - 1) // m) * m


def _cdiv(a, b):
    return (a + b - 1) // b


def _pad_axis(a, axis, size):
    pad = size - a.shape[axis]
    if pad == 0:
        return a
    widths = [(0, 0)] * a.ndim
    widths[axis] = (0, pad)
    return jnp.pad(a, widths)


def mine_kernel(x_ref, yy_ref, w1x_ref, w1y_ref, b1_ref, w2_ref, b2_ref,
                w3_ref, out_ref, sum_ref, m_ref, l_ref,
                *, batch_size, tile_rows, tiles_per_core):
    core = pl.program_id(0)
    step = pl.program_id(1)

    @pl.when(step == 0)
    def _init():
        sum_ref[...] = jnp.zeros_like(sum_ref)
        m_ref[...] = jnp.full_like(m_ref, -1e30)
        l_ref[...] = jnp.zeros_like(l_ref)

    x = x_ref[...]                      # (T, dx)     matmul_dtype
    yy = yy_ref[...]                    # (2, T, di)  matmul_dtype: [y ; shuffled_y]
    w1x = w1x_ref[...]                  # (dx, H)     matmul_dtype
    w1y = w1y_ref[...]                  # (di, H)     matmul_dtype
    w2 = w2_ref[...]                    # (H, H)      matmul_dtype
    b1 = b1_ref[...]                    # (1, H)      f32
    b2 = b2_ref[...]                    # (1, H)      f32
    w3 = w3_ref[...]                    # (1, H)      f32
    md = w2.dtype

    t = tile_rows
    hp = w2.shape[1]

    # Layer 1: x @ W1_x shared between halves; [y; ys] stacked into one matmul
    # against W1_y (single MXU weight push, taller LHS keeps the array full).
    xw = jnp.dot(x, w1x, preferred_element_type=jnp.float32)             # (T, H)
    yw = jnp.dot(yy.reshape(2 * t, yy.shape[-1]), w1y,
                 preferred_element_type=jnp.float32)                     # (2T, H)
    h1 = jnp.maximum(yw.reshape(2, t, hp) + xw[None, :, :] + b1, 0.0)    # (2, T, H)

    # Layer 2: stacked (2T, H) @ (H, H).
    h2 = jnp.maximum(
        jnp.dot(h1.reshape(2 * t, hp).astype(md), w2,
                preferred_element_type=jnp.float32) + b2, 0.0)           # (2T, H)
    h2_top = h2[:t]      # joint half   (rows paired with e_implicit)
    h2_bot = h2[t:]      # marginal half (rows paired with shuffled_y)

    # Mask rows beyond the real batch (zero-padded input rows would otherwise
    # contribute relu(bias) != 0).
    first_row = (core * tiles_per_core + step) * t
    row_ids = first_row + jax.lax.broadcasted_iota(jnp.int32, (t, 1), 0)
    valid = row_ids < batch_size

    # Joint half: sum_rows(h2 . w3) == column_sum(h2) . w3  (one XLU pass).
    h2_top = jnp.where(valid, h2_top, 0.0)
    sum_ref[...] += jnp.sum(
        jnp.sum(h2_top, axis=0, keepdims=True) * w3, axis=-1, keepdims=True)

    # Marginal half: per-row logits, online (max-subtracted) log-sum-exp.
    p = jnp.sum(h2_bot * w3, axis=-1, keepdims=True)                     # (T, 1)
    p = jnp.where(valid, p, -1e30)
    tile_max = jnp.max(p, keepdims=True)                                 # (1, 1)
    m_prev = m_ref[...]
    m_new = jnp.maximum(m_prev, tile_max)
    l_ref[...] = l_ref[...] * jnp.exp(m_prev - m_new) + jnp.sum(
        jnp.exp(p - m_new), keepdims=True)
    m_ref[...] = m_new

    @pl.when(step == pl.num_programs(1) - 1)
    def _finalize():
        # Pack this core's partial reduction state into lanes 0..2 of its
        # (8, 128) output block; merged (and scaled by log2(e)) in the wrapper.
        lane = jax.lax.broadcasted_iota(jnp.int32, (8, 128), 1)
        out_ref[...] = jnp.where(
            lane == 0, sum_ref[...],
            jnp.where(lane == 1, m_ref[...],
                      jnp.where(lane == 2, l_ref[...], 0.0)))


def mine_forward(e_explicit, e_implicit, params, perm_key, *,
                 matmul_dtype=jnp.bfloat16, max_tile_rows=2048, num_cores=2):
    """Reproduces MINE.forward.  Returns a scalar (float32)."""
    batch = e_explicit.shape[0]
    assert batch > 0, "MINE forward requires a non-empty batch"
    dim_explicit = e_explicit.shape[1]
    dim_implicit = e_implicit.shape[1]

    # torch.randperm(batch) -> deterministic JAX permutation (host-side glue).
    idx = jax.random.permutation(perm_key, batch)
    shuffled_y = e_implicit[idx]

    w1, b1, w2, b2, w3, b3 = params
    del b3  # cancels algebraically in the MI estimate

    hidden = w1.shape[1]
    hp = _round_up(hidden, 128)

    # Zero-pad hidden dim to a lane multiple (exact: padded units are dead).
    w1p = _pad_axis(w1, 1, hp)
    b1p = _pad_axis(b1, 1, hp).astype(jnp.float32)
    w2p = _pad_axis(_pad_axis(w2, 0, hp), 1, hp).astype(matmul_dtype)
    b2p = _pad_axis(b2, 1, hp).astype(jnp.float32)
    w3p = _pad_axis(w3, 1, hp).astype(jnp.float32)

    # Split W1 so the [x;x]/[y;ys] concat never has to materialize.
    w1x = w1p[:dim_explicit].astype(matmul_dtype)
    w1y = w1p[dim_explicit:].astype(matmul_dtype)

    # ---- Batch tiling (rows multiple of 8), split across `num_cores` ----
    # Shrink the tile for large hidden so the f32 (2*tile, hp) activations stay
    # comfortably inside the 32 MiB scoped-VMEM budget (fits v7x's 64 MiB/TC).
    tile_cap = max(8, ((16 * 1024 * 1024) // (32 * hp)) // 8 * 8)
    max_tile = max(8, min(max_tile_rows, tile_cap))
    tile0 = min(max_tile, _round_up(_cdiv(batch, num_cores), 8))
    tiles_per_core = _cdiv(batch, num_cores * tile0)
    tile = _round_up(_cdiv(batch, num_cores * tiles_per_core), 8)
    bp = num_cores * tiles_per_core * tile

    # Streamed inputs in matmul_dtype (bf16 halves the per-step HBM stream):
    # x on its own; [y ; shuffled_y] stacked into one slab (one DMA per step).
    x_pad = _pad_axis(e_explicit, 0, bp).astype(matmul_dtype)
    ycat = jnp.stack([_pad_axis(e_implicit, 0, bp),
                      _pad_axis(shuffled_y, 0, bp)], axis=0).astype(matmul_dtype)

    kernel = functools.partial(
        mine_kernel, batch_size=batch, tile_rows=tile,
        tiles_per_core=tiles_per_core)

    in_bytes = jnp.dtype(matmul_dtype).itemsize
    flops = 2 * bp * hp * (dim_explicit + 2 * dim_implicit + 2 * hp + 2)
    bytes_accessed = (bp * (dim_explicit + 2 * dim_implicit) * in_bytes
                      + (dim_explicit + dim_implicit + hp) * hp * in_bytes
                      + 3 * hp * 4 + num_cores * 8 * 128 * 4)

    parts = pl.pallas_call(
        kernel,
        out_shape=jax.ShapeDtypeStruct((num_cores * 8, 128), jnp.float32),
        grid_spec=pltpu.PrefetchScalarGridSpec(
            num_scalar_prefetch=0,
            grid=(num_cores, tiles_per_core),
            in_specs=[
                pl.BlockSpec((tile, dim_explicit),
                             lambda c, i: (c * tiles_per_core + i, 0)),      # x tile
                pl.BlockSpec((2, tile, dim_implicit),
                             lambda c, i: (0, c * tiles_per_core + i, 0)),   # [y; ys] tile
                pl.BlockSpec((dim_explicit, hp), lambda c, i: (0, 0)),       # W1_x (resident)
                pl.BlockSpec((dim_implicit, hp), lambda c, i: (0, 0)),       # W1_y (resident)
                pl.BlockSpec((1, hp), lambda c, i: (0, 0)),                  # b1
                pl.BlockSpec((hp, hp), lambda c, i: (0, 0)),                 # W2 (resident)
                pl.BlockSpec((1, hp), lambda c, i: (0, 0)),                  # b2
                pl.BlockSpec((1, hp), lambda c, i: (0, 0)),                  # w3 row vector
            ],
            out_specs=pl.BlockSpec((8, 128), lambda c, i: (c, 0)),
            scratch_shapes=[
                pltpu.VMEM((1, 1), jnp.float32),   # running sum of joint logits
                pltpu.VMEM((1, 1), jnp.float32),   # running max (marginal)
                pltpu.VMEM((1, 1), jnp.float32),   # running sum(exp(p - max))
            ],
        ),
        compiler_params=pltpu.CompilerParams(
            dimension_semantics=("parallel", "arbitrary"),
            vmem_limit_bytes=32 * 1024 * 1024,     # safe on v5e/v6e/v7x
        ),
        cost_estimate=pl.CostEstimate(
            flops=int(flops), transcendentals=int(bp),
            bytes_accessed=int(bytes_accessed)),
    )(x_pad, ycat, w1x, w1y, b1p, w2p, b2p, w3p)

    # Merge the per-core partial reductions and apply the final MI formula.
    sums = parts[0::8, 0]
    ms = parts[0::8, 1]
    ls = parts[0::8, 2]
    big_m = jnp.max(ms)
    big_l = jnp.sum(ls * jnp.exp(ms - big_m))
    mean_xy = jnp.sum(sums) / batch
    log_mean_exp = big_m + jnp.log(big_l / batch)
    return (1.0 / math.log(2.0)) * (mean_xy - log_mean_exp)


def init_params(key, dim_explicit, dim_implicit, hidden_dim):
    """Deterministic init mimicking nn.Linear's uniform(-1/sqrt(fan_in), 1/sqrt(fan_in))."""
    d_in = dim_explicit + dim_implicit
    k1, k2, k3, k4, k5, k6 = jax.random.split(key, 6)

    def unif(k, shape, fan_in):
        bound = 1.0 / math.sqrt(fan_in)
        return jax.random.uniform(k, shape, jnp.float32, -bound, bound)

    w1 = unif(k1, (d_in, hidden_dim), d_in)
    b1 = unif(k2, (1, hidden_dim), d_in)
    w2 = unif(k3, (hidden_dim, hidden_dim), hidden_dim)
    b2 = unif(k4, (1, hidden_dim), hidden_dim)
    w3 = unif(k5, (1, hidden_dim), hidden_dim)   # row vector of Linear(hidden, 1)
    b3 = unif(k6, (1, 1), hidden_dim)
    return (w1, b1, w2, b2, w3, b3)


def mine_reference(e_explicit, e_implicit, params, perm_key):
    """Pure-JAX reference matching the PyTorch module (validation only)."""
    batch_size = e_explicit.shape[0]
    idx = jax.random.permutation(perm_key, batch_size)
    shuffled_y = e_implicit[idx]
    tiled_x = jnp.concatenate([e_explicit, e_explicit], axis=0)
    concat_y = jnp.concatenate([e_implicit, shuffled_y], axis=0)
    x = jnp.concatenate([tiled_x, concat_y], axis=1).astype(jnp.float32)

    w1, b1, w2, b2, w3, b3 = params
    h1 = jnp.maximum(x @ w1 + b1, 0.0)
    h2 = jnp.maximum(h1 @ w2 + b2, 0.0)
    logits = jnp.sum(h2 * w3, axis=-1, keepdims=True) + b3[0, 0]
    pred_xy = logits[:batch_size]
    pred_x_y = logits[batch_size:]
    return (1.0 / jnp.log(2.0)) * (
        jnp.mean(pred_xy) - jnp.log(jnp.mean(jnp.exp(pred_x_y)))
    )


if __name__ == "__main__":
    batch = 8
    dim_explicit = 16
    dim_implicit = 16
    hidden_dim = 32

    key = jax.random.PRNGKey(0)
    k_x, k_y, k_params, k_perm = jax.random.split(key, 4)

    e_explicit = jax.random.normal(k_x, (batch, dim_explicit), jnp.float32)
    e_implicit = jax.random.normal(k_y, (batch, dim_implicit), jnp.float32)
    params = init_params(k_params, dim_explicit, dim_implicit, hidden_dim)

    mi_ref = mine_reference(e_explicit, e_implicit, params, k_perm)

    # f32 matmul path (tight check vs reference).
    mi_f32 = mine_forward(e_explicit, e_implicit, params, k_perm,
                          matmul_dtype=jnp.float32)
    jax.block_until_ready(mi_f32)
    assert jnp.allclose(mi_f32, mi_ref, atol=1e-4, rtol=1e-4), (mi_f32, mi_ref)

    # Default path: bf16 MXU operands + bf16 input streaming, f32 accumulation.
    mi_bf16 = mine_forward(e_explicit, e_implicit, params, k_perm)
    jax.block_until_ready(mi_bf16)
    assert jnp.allclose(mi_bf16, mi_ref, atol=5e-2, rtol=5e-2), (mi_bf16, mi_ref)

    print("KERNEL_OK")
</pallas_src>

<mosaic_0001>
module attributes {stable_mosaic.version = 11 : i64} {
  func.func @mine_kernel(%arg0: i32, %arg1: i32, %arg2: memref<8x16xf32, #tpu.memory_space<vmem>>, %arg3: memref<2x8x16xf32, #tpu.memory_space<vmem>>, %arg4: memref<16x128xf32, #tpu.memory_space<vmem>>, %arg5: memref<16x128xf32, #tpu.memory_space<vmem>>, %arg6: memref<1x128xf32, #tpu.memory_space<vmem>>, %arg7: memref<128x128xf32, #tpu.memory_space<vmem>>, %arg8: memref<1x128xf32, #tpu.memory_space<vmem>>, %arg9: memref<1x128xf32, #tpu.memory_space<vmem>>, %arg10: memref<8x128xf32, #tpu.memory_space<vmem>>, %arg11: memref<1x1xf32, #tpu.memory_space<vmem>>, %arg12: memref<1x1xf32, #tpu.memory_space<vmem>>, %arg13: memref<1x1xf32, #tpu.memory_space<vmem>>) attributes {dimension_semantics = [#tpu.dimension_semantics<parallel>, #tpu.dimension_semantics<arbitrary>], iteration_bounds = array<i64: 2, 1>, scalar_prefetch = 0 : i64, scratch_operands = 3 : i64, tpu.core_type = #tpu.core_type<tc>, window_params = [{transform_indices = @transform_0, window_bounds = array<i64: 8, 16>}, {transform_indices = @transform_1, window_bounds = array<i64: 2, 8, 16>}, {pipeline_mode = #tpu.pipeline_mode<synchronous>, transform_indices = @transform_2, window_bounds = array<i64: 16, 128>}, {pipeline_mode = #tpu.pipeline_mode<synchronous>, transform_indices = @transform_3, window_bounds = array<i64: 16, 128>}, {pipeline_mode = #tpu.pipeline_mode<synchronous>, transform_indices = @transform_4, window_bounds = array<i64: 1, 128>}, {pipeline_mode = #tpu.pipeline_mode<synchronous>, transform_indices = @transform_5, window_bounds = array<i64: 128, 128>}, {pipeline_mode = #tpu.pipeline_mode<synchronous>, transform_indices = @transform_6, window_bounds = array<i64: 1, 128>}, {pipeline_mode = #tpu.pipeline_mode<synchronous>, transform_indices = @transform_7, window_bounds = array<i64: 1, 128>}, {transform_indices = @transform_8, window_bounds = array<i64: 8, 128>}]} {
    %c0_i32 = arith.constant 0 : i32
    %0 = arith.cmpi eq, %arg1, %c0_i32 : i32
    %1 = arith.extui %0 : i1 to i32
    %c0_i32_0 = arith.constant 0 : i32
    %2 = arith.cmpi ne, %1, %c0_i32_0 : i32
    scf.if %2 {
      %cst_43 = arith.constant 0.000000e+00 : f32
      %82 = vector.broadcast %cst_43 : f32 to vector<1x1xf32>
      %c0_44 = arith.constant 0 : index
      %c0_45 = arith.constant 0 : index
      %83 = vector.load %arg11[%c0_44, %c0_45] : memref<1x1xf32, #tpu.memory_space<vmem>>, vector<1x1xf32>
      tpu.vector_store %arg11[%c0_44, %c0_45], %82 {strides = array<i32>} : memref<1x1xf32, #tpu.memory_space<vmem>>, vector<1x1xf32>,
      %cst_46 = arith.constant -1.000000e+30 : f32
      %84 = vector.broadcast %cst_46 : f32 to vector<1x1xf32>
      %c0_47 = arith.constant 0 : index
      %c0_48 = arith.constant 0 : index
      %85 = vector.load %arg12[%c0_47, %c0_48] : memref<1x1xf32, #tpu.memory_space<vmem>>, vector<1x1xf32>
      tpu.vector_store %arg12[%c0_47, %c0_48], %84 {strides = array<i32>} : memref<1x1xf32, #tpu.memory_space<vmem>>, vector<1x1xf32>,
      %cst_49 = arith.constant 0.000000e+00 : f32
      %86 = vector.broadcast %cst_49 : f32 to vector<1x1xf32>
      %c0_50 = arith.constant 0 : index
      %c0_51 = arith.constant 0 : index
      %87 = vector.load %arg13[%c0_50, %c0_51] : memref<1x1xf32, #tpu.memory_space<vmem>>, vector<1x1xf32>
      tpu.vector_store %arg13[%c0_50, %c0_51], %86 {strides = array<i32>} : memref<1x1xf32, #tpu.memory_space<vmem>>, vector<1x1xf32>,
    } else {
    }
    %c0 = arith.constant 0 : index
    %c0_1 = arith.constant 0 : index
    %3 = vector.load %arg2[%c0, %c0_1] : memref<8x16xf32, #tpu.memory_space<vmem>>, vector<8x16xf32>
    %c0_2 = arith.constant 0 : index
    %c0_3 = arith.constant 0 : index
    %c0_4 = arith.constant 0 : index
    %4 = vector.load %arg3[%c0_2, %c0_3, %c0_4] : memref<2x8x16xf32, #tpu.memory_space<vmem>>, vector<2x8x16xf32>
    %c0_5 = arith.constant 0 : index
    %c0_6 = arith.constant 0 : index
    %5 = vector.load %arg4[%c0_5, %c0_6] : memref<16x128xf32, #tpu.memory_space<vmem>>, vector<16x128xf32>
    %c0_7 = arith.constant 0 : index
    %c0_8 = arith.constant 0 : index
    %6 = vector.load %arg5[%c0_7, %c0_8] : memref<16x128xf32, #tpu.memory_space<vmem>>, vector<16x128xf32>
    %c0_9 = arith.constant 0 : index
    %c0_10 = arith.constant 0 : index
    %7 = vector.load %arg7[%c0_9, %c0_10] : memref<128x128xf32, #tpu.memory_space<vmem>>, vector<128x128xf32>
    %c0_11 = arith.constant 0 : index
    %c0_12 = arith.constant 0 : index
    %8 = vector.load %arg6[%c0_11, %c0_12] : memref<1x128xf32, #tpu.memory_space<vmem>>, vector<1x128xf32>
    %c0_13 = arith.constant 0 : index
    %c0_14 = arith.constant 0 : index
    %9 = vector.load %arg8[%c0_13, %c0_14] : memref<1x128xf32, #tpu.memory_space<vmem>>, vector<1x128xf32>
    %c0_15 = arith.constant 0 : index
    %c0_16 = arith.constant 0 : index
    %10 = vector.load %arg9[%c0_15, %c0_16] : memref<1x128xf32, #tpu.memory_space<vmem>>, vector<1x128xf32>
    %cst = arith.constant dense<0.000000e+00> : vector<8x128xf32>
    %11 = tpu.matmul %3, %5, %cst {dimension_numbers = #tpu.dot_dimension_numbers<[1], [0], [0], [1], [0, 0, 1, 1], [], []>} : vector<8x16xf32>, vector<16x128xf32>, vector<8x128xf32> -> vector<8x128xf32>
    %12 = vector.shape_cast %4 : vector<2x8x16xf32> to vector<16x16xf32>
    %cst_17 = arith.constant dense<0.000000e+00> : vector<16x128xf32>
    %13 = tpu.matmul %12, %6, %cst_17 {dimension_numbers = #tpu.dot_dimension_numbers<[1], [0], [0], [1], [0, 0, 1, 1], [], []>} : vector<16x16xf32>, vector<16x128xf32>, vector<16x128xf32> -> vector<16x128xf32>
    %14 = vector.shape_cast %13 : vector<16x128xf32> to vector<2x8x128xf32>
    %15 = vector.shape_cast %11 : vector<8x128xf32> to vector<1x8x128xf32>
    %16 = vector.broadcast %15 : vector<1x8x128xf32> to vector<2x8x128xf32>
    %17 = arith.addf %14, %16 : vector<2x8x128xf32>
    %18 = vector.shape_cast %8 : vector<1x128xf32> to vector<1x1x128xf32>
    %19 = vector.broadcast %18 : vector<1x1x128xf32> to vector<2x8x128xf32>
    %20 = arith.addf %17, %19 : vector<2x8x128xf32>
    %cst_18 = arith.constant 0.000000e+00 : f32
    %21 = vector.broadcast %cst_18 : f32 to vector<2x8x128xf32>
    %22 = arith.maximumf %20, %21 : vector<2x8x128xf32>
    %23 = vector.shape_cast %22 : vector<2x8x128xf32> to vector<16x128xf32>
    %cst_19 = arith.constant dense<0.000000e+00> : vector<16x128xf32>
    %24 = tpu.matmul %23, %7, %cst_19 {dimension_numbers = #tpu.dot_dimension_numbers<[1], [0], [0], [1], [0, 0, 1, 1], [], []>} : vector<16x128xf32>, vector<128x128xf32>, vector<16x128xf32> -> vector<16x128xf32>
    %25 = vector.broadcast %9 : vector<1x128xf32> to vector<16x128xf32>
    %26 = arith.addf %24, %25 : vector<16x128xf32>
    %cst_20 = arith.constant 0.000000e+00 : f32
    %27 = vector.broadcast %cst_20 : f32 to vector<16x128xf32>
    %28 = arith.maximumf %26, %27 : vector<16x128xf32>
    %29 = vector.extract_strided_slice %28 {offsets = [0, 0], sizes = [8, 128], strides = [1, 1]} : vector<16x128xf32> to vector<8x128xf32>
    %30 = vector.extract_strided_slice %28 {offsets = [8, 0], sizes = [8, 128], strides = [1, 1]} : vector<16x128xf32> to vector<8x128xf32>
    %c1_i32 = arith.constant 1 : i32
    %31 = arith.muli %arg0, %c1_i32 : i32
    %32 = arith.addi %31, %arg1 : i32
    %c8_i32 = arith.constant 8 : i32
    %33 = arith.muli %32, %c8_i32 : i32
    %34 = tpu.iota {dimensions = array<i32: 0>} : vector<8x1xi32>
    %35 = vector.broadcast %33 : i32 to vector<8x1xi32>
    %36 = arith.addi %35, %34 : vector<8x1xi32>
    %c8_i32_21 = arith.constant 8 : i32
    %37 = vector.broadcast %c8_i32_21 : i32 to vector<8x1xi32>
    %38 = arith.cmpi slt, %36, %37 : vector<8x1xi32>
    %cst_22 = arith.constant 0.000000e+00 : f32
    %39 = vector.shape_cast %38 : vector<8x1xi1> to vector<8x1xi1>
    %40 = vector.broadcast %39 : vector<8x1xi1> to vector<8x128xi1>
    %41 = vector.broadcast %cst_22 : f32 to vector<8x128xf32>
    %42 = arith.select %40, %29, %41 : vector<8x128xi1>, vector<8x128xf32>
    %c0_23 = arith.constant 0 : index
    %c0_24 = arith.constant 0 : index
    %43 = vector.load %arg11[%c0_23, %c0_24] : memref<1x1xf32, #tpu.memory_space<vmem>>, vector<1x1xf32>
    %cst_25 = arith.constant dense<0.000000e+00> : vector<128xf32>
    %44 = vector.multi_reduction <add>, %42, %cst_25 [0] : vector<8x128xf32> to vector<128xf32>
    %45 = vector.shape_cast %44 : vector<128xf32> to vector<1x128xf32>
    %46 = arith.mulf %45, %10 : vector<1x128xf32>
    %cst_26 = arith.constant dense<0.000000e+00> : vector<1xf32>
    %47 = vector.multi_reduction <add>, %46, %cst_26 [1] : vector<1x128xf32> to vector<1xf32>
    %48 = vector.shape_cast %47 : vector<1xf32> to vector<1x1xf32>
    %49 = arith.addf %43, %48 : vector<1x1xf32>
    %c0_27 = arith.constant 0 : index
    %c0_28 = arith.constant 0 : index
    %50 = vector.load %arg11[%c0_27, %c0_28] : memref<1x1xf32, #tpu.memory_space<vmem>>, vector<1x1xf32>
    tpu.vector_store %arg11[%c0_27, %c0_28], %49 {strides = array<i32>} : memref<1x1xf32, #tpu.memory_space<vmem>>, vector<1x1xf32>,
    %51 = vector.broadcast %10 : vector<1x128xf32> to vector<8x128xf32>
    %52 = arith.mulf %30, %51 : vector<8x128xf32>
    %cst_29 = arith.constant dense<0.000000e+00> : vector<8xf32>
    %53 = vector.multi_reduction <add>, %52, %cst_29 [1] : vector<8x128xf32> to vector<8xf32>
    %54 = vector.shape_cast %53 : vector<8xf32> to vector<8x1xf32>
    %cst_30 = arith.constant -1.000000e+30 : f32
    %55 = vector.broadcast %cst_30 : f32 to vector<8x1xf32>
    %56 = arith.select %38, %54, %55 : vector<8x1xi1>, vector<8x1xf32>
    %57 = vector.shape_cast %56 : vector<8x1xf32> to vector<1x8x1xf32>
    %cst_31 = arith.constant dense<0xFF800000> : vector<1xf32>
    %58 = vector.multi_reduction <maximumf>, %57, %cst_31 [1, 2] : vector<1x8x1xf32> to vector<1xf32>
    %59 = vector.shape_cast %58 : vector<1xf32> to vector<1x1x1xf32>
    %60 = vector.extract %59[0, 0, 0] : f32 from vector<1x1x1xf32>
    %61 = vector.broadcast %60 : f32 to vector<1x1xf32>
    %c0_32 = arith.constant 0 : index
    %c0_33 = arith.constant 0 : index
    %62 = vector.load %arg12[%c0_32, %c0_33] : memref<1x1xf32, #tpu.memory_space<vmem>>, vector<1x1xf32>
    %63 = arith.maximumf %62, %61 : vector<1x1xf32>
    %c0_34 = arith.constant 0 : index
    %c0_35 = arith.constant 0 : index
    %64 = vector.load %arg13[%c0_34, %c0_35] : memref<1x1xf32, #tpu.memory_space<vmem>>, vector<1x1xf32>
    %65 = arith.subf %62, %63 : vector<1x1xf32>
    %66 = math.exp %65 : vector<1x1xf32>
    %67 = arith.mulf %64, %66 : vector<1x1xf32>
    %68 = vector.broadcast %63 : vector<1x1xf32> to vector<8x1xf32>
    %69 = arith.subf %56, %68 : vector<8x1xf32>
    %70 = math.exp %69 : vector<8x1xf32>
    %71 = vector.shape_cast %70 : vector<8x1xf32> to vector<1x8x1xf32>
    %cst_36 = arith.constant dense<0.000000e+00> : vector<1xf32>
    %72 = vector.multi_reduction <add>, %71, %cst_36 [1, 2] : vector<1x8x1xf32> to vector<1xf32>
    %73 = vector.shape_cast %72 : vector<1xf32> to vector<1x1x1xf32>
    %74 = vector.extract %73[0, 0, 0] : f32 from vector<1x1x1xf32>
    %75 = vector.broadcast %74 : f32 to vector<1x1xf32>
    %76 = arith.addf %67, %75 : vector<1x1xf32>
    %c0_37 = arith.constant 0 : index
    %c0_38 = arith.constant 0 : index
    %77 = vector.load %arg13[%c0_37, %c0_38] : memref<1x1xf32, #tpu.memory_space<vmem>>, vector<1x1xf32>
    tpu.vector_store %arg13[%c0_37, %c0_38], %76 {strides = array<i32>} : memref<1x1xf32, #tpu.memory_space<vmem>>, vector<1x1xf32>,
    %c0_39 = arith.constant 0 : index
    %c0_40 = arith.constant 0 : index
    %78 = vector.load %arg12[%c0_39, %c0_40] : memref<1x1xf32, #tpu.memory_space<vmem>>, vector<1x1xf32>
    tpu.vector_store %arg12[%c0_39, %c0_40], %63 {strides = array<i32>} : memref<1x1xf32, #tpu.memory_space<vmem>>, vector<1x1xf32>,
    %c0_i32_41 = arith.constant 0 : i32
    %79 = arith.cmpi eq, %arg1, %c0_i32_41 : i32
    %80 = arith.extui %79 : i1 to i32
    %c0_i32_42 = arith.constant 0 : i32
    %81 = arith.cmpi ne, %80, %c0_i32_42 : i32
    scf.if %81 {
      %82 = tpu.iota {dimensions = array<i32: 1>} : vector<8x128xi32>
      %c0_i32_43 = arith.constant 0 : i32
      %83 = vector.broadcast %c0_i32_43 : i32 to vector<8x128xi32>
      %84 = arith.cmpi eq, %82, %83 : vector<8x128xi32>
      %c0_44 = arith.constant 0 : index
      %c0_45 = arith.constant 0 : index
      %85 = vector.load %arg11[%c0_44, %c0_45] : memref<1x1xf32, #tpu.memory_space<vmem>>, vector<1x1xf32>
      %c1_i32_46 = arith.constant 1 : i32
      %86 = vector.broadcast %c1_i32_46 : i32 to vector<8x128xi32>
      %87 = arith.cmpi eq, %82, %86 : vector<8x128xi32>
      %c0_47 = arith.constant 0 : index
      %c0_48 = arith.constant 0 : index
      %88 = vector.load %arg12[%c0_47, %c0_48] : memref<1x1xf32, #tpu.memory_space<vmem>>, vector<1x1xf32>
      %c2_i32 = arith.constant 2 : i32
      %89 = vector.broadcast %c2_i32 : i32 to vector<8x128xi32>
      %90 = arith.cmpi eq, %82, %89 : vector<8x128xi32>
      %c0_49 = arith.constant 0 : index
      %c0_50 = arith.constant 0 : index
      %91 = vector.load %arg13[%c0_49, %c0_50] : memref<1x1xf32, #tpu.memory_space<vmem>>, vector<1x1xf32>
      %cst_51 = arith.constant 0.000000e+00 : f32
      %92 = vector.shape_cast %91 : vector<1x1xf32> to vector<1x1xf32>
      %93 = vector.broadcast %92 : vector<1x1xf32> to vector<8x128xf32>
      %94 = vector.broadcast %cst_51 : f32 to vector<8x128xf32>
      %95 = arith.select %90, %93, %94 : vector<8x128xi1>, vector<8x128xf32>
      %96 = vector.shape_cast %88 : vector<1x1xf32> to vector<1x1xf32>
      %97 = vector.broadcast %96 : vector<1x1xf32> to vector<8x128xf32>
      %98 = arith.select %87, %97, %95 : vector<8x128xi1>, vector<8x128xf32>
      %99 = vector.shape_cast %85 : vector<1x1xf32> to vector<1x1xf32>
      %100 = vector.broadcast %99 : vector<1x1xf32> to vector<8x128xf32>
      %101 = arith.select %84, %100, %98 : vector<8x128xi1>, vector<8x128xf32>
      %c0_52 = arith.constant 0 : index
      %c0_53 = arith.constant 0 : index
      %102 = vector.load %arg10[%c0_52, %c0_53] : memref<8x128xf32, #tpu.memory_space<vmem>>, vector<8x128xf32>
      tpu.vector_store %arg10[%c0_52, %c0_53], %101 {strides = array<i32>} : memref<8x128xf32, #tpu.memory_space<vmem>>, vector<8x128xf32>,
    } else {
    }
    return
  }
  func.func @transform_0(%arg0: i32, %arg1: i32) -> (i32, i32) {
    %c1_i32 = arith.constant 1 : i32
    %0 = arith.muli %arg0, %c1_i32 : i32
    %1 = arith.addi %0, %arg1 : i32
    %c0_i32 = arith.constant 0 : i32
    %c0_i32_0 = arith.constant 0 : i32
    return %1, %c0_i32 : i32, i32
  }
  func.func @transform_1(%arg0: i32, %arg1: i32) -> (i32, i32, i32) {
    %c1_i32 = arith.constant 1 : i32
    %0 = arith.muli %arg0, %c1_i32 : i32
    %1 = arith.addi %0, %arg1 : i32
    %c0_i32 = arith.constant 0 : i32
    %c0_i32_0 = arith.constant 0 : i32
    %c0_i32_1 = arith.constant 0 : i32
    return %c0_i32, %1, %c0_i32_0 : i32, i32, i32
  }
  func.func @transform_2(%arg0: i32, %arg1: i32) -> (i32, i32) {
    %c0_i32 = arith.constant 0 : i32
    %c0_i32_0 = arith.constant 0 : i32
    %c0_i32_1 = arith.constant 0 : i32
    return %c0_i32, %c0_i32_0 : i32, i32
  }
  func.func @transform_3(%arg0: i32, %arg1: i32) -> (i32, i32) {
    %c0_i32 = arith.constant 0 : i32
    %c0_i32_0 = arith.constant 0 : i32
    %c0_i32_1 = arith.constant 0 : i32
    return %c0_i32, %c0_i32_0 : i32, i32
  }
  func.func @transform_4(%arg0: i32, %arg1: i32) -> (i32, i32) {
    %c0_i32 = arith.constant 0 : i32
    %c0_i32_0 = arith.constant 0 : i32
    %c0_i32_1 = arith.constant 0 : i32
    return %c0_i32, %c0_i32_0 : i32, i32
  }
  func.func @transform_5(%arg0: i32, %arg1: i32) -> (i32, i32) {
    %c0_i32 = arith.constant 0 : i32
    %c0_i32_0 = arith.constant 0 : i32
    %c0_i32_1 = arith.constant 0 : i32
    return %c0_i32, %c0_i32_0 : i32, i32
  }
  func.func @transform_6(%arg0: i32, %arg1: i32) -> (i32, i32) {
    %c0_i32 = arith.constant 0 : i32
    %c0_i32_0 = arith.constant 0 : i32
    %c0_i32_1 = arith.constant 0 : i32
    return %c0_i32, %c0_i32_0 : i32, i32
  }
  func.func @transform_7(%arg0: i32, %arg1: i32) -> (i32, i32) {
    %c0_i32 = arith.constant 0 : i32
    %c0_i32_0 = arith.constant 0 : i32
    %c0_i32_1 = arith.constant 0 : i32
    return %c0_i32, %c0_i32_0 : i32, i32
  }
  func.func @transform_8(%arg0: i32, %arg1: i32) -> (i32, i32) {
    %c0_i32 = arith.constant 0 : i32
    %c0_i32_0 = arith.constant 0 : i32
    return %arg0, %c0_i32 : i32, i32
  }
}

</mosaic_0001>

<llo_original>
// kernel: tpu_custom_call.1
$region0: #{tpu_custom_call.1}
  #allocation0 [shape = 'u32[]', space=smem, size = 0x4, offset = 0x4, fixed_abs, tag = 'smem constant byte address 0x4 - core index']
  #allocation1 [shape = 'u32[72,128]{1,0:T(1,128)}', space=vmem, size = 0x9000, scoped, tag = 'internal scratch']
  #allocation2 [shape = 'f32[1,1]{1,0:T(1,128)}', space=vmem, size = 0x200, scoped, tag = 'scratch operand']
  #allocation3 [shape = 'f32[1,1]{1,0:T(1,128)}', space=vmem, size = 0x200, scoped, tag = 'scratch operand']
  #allocation4 [shape = 'f32[1,1]{1,0:T(1,128)}', space=vmem, size = 0x200, scoped, tag = 'scratch operand']
  %s0 = inlined_call_operand.hbm [shape: f32[16,16], index: 0, kind: input, shape index: {}]
  %s1 = inlined_call_operand.hbm [shape: f32[2,16,16], index: 1, kind: input, shape index: {}]
  %s2 = inlined_call_operand.hbm [shape: f32[16,128], index: 2, kind: input, shape index: {}]
  %s3 = inlined_call_operand.hbm [shape: f32[16,128], index: 3, kind: input, shape index: {}]
  %s4 = inlined_call_operand.vmem [shape: f32[1,128], index: 4, kind: input, shape index: {}]
  %s5 = inlined_call_operand.hbm [shape: f32[128,128], index: 5, kind: input, shape index: {}]
  %s6 = inlined_call_operand.vmem [shape: f32[1,128], index: 6, kind: input, shape index: {}]
  %s7 = inlined_call_operand.vmem [shape: f32[1,128], index: 7, kind: input, shape index: {}]
  %s8 = inlined_call_operand.hbm [shape: f32[16,128], index: 8, kind: output, shape index: {}]
  %s9 = sld [smem:[#allocation0]]
  $region93: #{tpu_custom_call.1} parent=0
    _
  %s11 = ssub.s32 1, %s9
  %s12 = scalar_select 0, %s11, %s9
  $region1: #{tpu_custom_call.1} parent=0
    #allocation5 [shape = 'u8[8192]{0}', space=vmem, size = 0x2000, scoped, tag = 'input window, operand 0']
    #allocation6 [shape = 's32[2]{0}', space=sflag, size = 0x8, scoped, tag = 'scoped memory for tpu_custom_call.1']
    #allocation7 [shape = 's32[2]{0}', space=sflag, size = 0x8, scoped, tag = 'scoped memory for tpu_custom_call.1']
    #allocation8 [shape = 'u8[16384]{0}', space=vmem, size = 0x4000, scoped, tag = 'input window, operand 1']
    #allocation9 [shape = 's32[2]{0}', space=sflag, size = 0x8, scoped, tag = 'scoped memory for tpu_custom_call.1']
    #allocation10 [shape = 'u8[8192]{0}', space=vmem, size = 0x2000, scoped, tag = 'input window, operand 2, single buffered']
    #allocation11 [shape = 'u8[8192]{0}', space=vmem, size = 0x2000, scoped, tag = 'input window, operand 3, single buffered']
    #allocation12 [shape = 's32[1]{0}', space=sflag, size = 0x4, scoped, tag = 'scoped memory for tpu_custom_call.1']
    #allocation13 [shape = 'u8[65536]{0}', space=vmem, size = 0x10000, scoped, tag = 'input window, operand 5, single buffered']
    #allocation14 [shape = 'u8[8192]{0}', space=vmem, size = 0x2000, scoped, tag = 'output window, operand 0']
    %13 = vsyncpa [#allocation6], 0
    %s14 = scalar_lea.sflag [#allocation6], 1
    %15 = vsyncpa %s14, 0
    %16 = vsyncpa [#allocation9], 0
    %s17 = scalar_lea.sflag [#allocation9], 1
    %18 = vsyncpa %s17, 0
    %19 = vsyncpa [#allocation12], 0
    %20 = vsyncpa [#allocation7], 0
    %s21 = scalar_lea.sflag [#allocation7], 1
    %22 = vsyncpa %s21, 0
    loop: start=0, step=1, limit=4
    $region2: #{tpu_custom_call.1} parent=1 // loop_pre_header
      _
    $region3: #{tpu_custom_call.1} parent=1 // loop_header
      %s24 = sphi 0, %s28
      %p25 = scmp.ge.s32.totalorder %s24, 4
      %s31 = sphi 0, %s43
      %s32 = sphi 0, %s39
      %s33 = sphi 0, %s31
      %s34 = sphi 0, %s32
      %s35 = sphi 0, %s33
      %s36 = sphi 0, %s34
      %s48 = sphi 0, %s50
      %s51 = sphi 0, %s48
      %s52 = sphi 0, %s51
      %s68 = sphi 0, %s52
      %s76 = sphi 0, %s78
      %s79 = sphi 0, %s76
      %s80 = sphi 0, %s79
      %s96 = sphi 0, %s80
      %s100 = sphi 0, %s100
      %s102 = sphi 0, %s100
      %s103 = sphi 0, %s102
      %s117 = sphi 0, %s103
      %s121 = sphi 0, %s121
      %s123 = sphi 0, %s121
      %s124 = sphi 0, %s123
      %s138 = sphi 0, %s124
      %s142 = sphi 0, %s142
      %s144 = sphi 0, %s142
      %s145 = sphi 0, %s144
      %s159 = sphi 0, %s145
      %s163 = sphi 0, %s163
      %s165 = sphi 0, %s163
      %s166 = sphi 0, %s165
      %s180 = sphi 0, %s166
      %s184 = sphi 0, %s184
      %s186 = sphi 0, %s184
      %s187 = sphi 0, %s186
      %s201 = sphi 0, %s187
      %s205 = sphi 0, %s205
      %s207 = sphi 0, %s205
      %s208 = sphi 0, %s207
      %s222 = sphi 0, %s208
      %s228 = sphi 0, %s230
      %s231 = sphi 0, %s228
      %s232 = sphi 0, %s231
      %s248 = sphi 0, %s232
    $region4: #{tpu_custom_call.1} parent=1 // loop_header_branch
      %27 = sbr.rel (%p25) target = $region8
    $region5: #{tpu_custom_call.1} parent=1 // loop_body
      %s29 = ssub.s32 %s24, 1
      %s30 = ssub.s32 %s24, 2
      %s37 = sadd.s32 1, %s32
      %p38 = scmp.ge.s32.totalorder %s37, 1
      %s39 = scalar_select %p38, 0, %s37
      %s40 = sadd.s32 1, %s31
      %s41 = scalar_select %p38, %s40, %s31
      %p42 = scmp.ge.s32.totalorder %s41, 2
      %s43 = scalar_select %p42, 0, %s41
      %s44 = sadd.s32 %s31, %s32
      %s45 = sadd.s32 %s43, %s39
      %s46 = ssub.s32 %s44, %s45
      %p47 = scmp.eq.s32.totalorder %s46, 0
      %s49 = sadd.s32 %s48, 1
      %s50 = scalar_select %p47, %s48, %s49
      %p53 = pneg %p47
      %p54 = scmp.eq.s32.totalorder %s24, 1
      %p55 = por %p53, %p54
      %p56 = scmp.ne.s32.totalorder %s48, %s51
      %p57 = scmp.eq.s32.totalorder %s24, 0
      %p58 = por %p56, %p57
      %p59 = scmp.ne.s32.totalorder %s48, %s51
      %p60 = scmp.eq.s32.totalorder %s29, 1
      %p61 = por %p59, %p60
      %p62 = scmp.ne.s32.totalorder %s51, %s52
      %p63 = scmp.eq.s32.totalorder %s29, 0
      %p64 = por %p62, %p63
      %p65 = scmp.ne.s32.totalorder %s51, %s52
      %p66 = scmp.eq.s32.totalorder %s30, 1
      %p67 = por %p65, %p66
      %p69 = scmp.ne.s32.totalorder %s52, %s68
      %p70 = scmp.eq.s32.totalorder %s30, 0
      %p71 = por %p69, %p70
      %s72 = sadd.s32 %s31, %s32
      %s73 = sadd.s32 %s43, %s39
      %s74 = ssub.s32 %s72, %s73
      %p75 = scmp.eq.s32.totalorder %s74, 0
      %s77 = sadd.s32 %s76, 1
      %s78 = scalar_select %p75, %s76, %s77
      %p81 = pneg %p75
      %p82 = scmp.eq.s32.totalorder %s24, 1
      %p83 = por %p81, %p82
      %p84 = scmp.ne.s32.totalorder %s76, %s79
      %p85 = scmp.eq.s32.totalorder %s24, 0
      %p86 = por %p84, %p85
      %p87 = scmp.ne.s32.totalorder %s76, %s79
      %p88 = scmp.eq.s32.totalorder %s29, 1
      %p89 = por %p87, %p88
      %p90 = scmp.ne.s32.totalorder %s79, %s80
      %p91 = scmp.eq.s32.totalorder %s29, 0
      %p92 = por %p90, %p91
      %p93 = scmp.ne.s32.totalorder %s79, %s80
      %p94 = scmp.eq.s32.totalorder %s30, 1
      %p95 = por %p93, %p94
      %p97 = scmp.ne.s32.totalorder %s80, %s96
      %p98 = scmp.eq.s32.totalorder %s30, 0
      %p99 = por %p97, %p98
      %s101 = sadd.s32 %s100, 1
      %p104 = scmp.eq.s32.totalorder %s24, 1
      %p105 = scmp.ne.s32.totalorder %s100, %s102
      %p106 = scmp.eq.s32.totalorder %s24, 0
      %p107 = por %p105, %p106
      %p108 = scmp.ne.s32.totalorder %s100, %s102
      %p109 = scmp.eq.s32.totalorder %s29, 1
      %p110 = por %p108, %p109
      %p111 = scmp.ne.s32.totalorder %s102, %s103
      %p112 = scmp.eq.s32.totalorder %s29, 0
      %p113 = por %p111, %p112
      %p114 = scmp.ne.s32.totalorder %s102, %s103
      %p115 = scmp.eq.s32.totalorder %s30, 1
      %p116 = por %p114, %p115
      %p118 = scmp.ne.s32.totalorder %s103, %s117
      %p119 = scmp.eq.s32.totalorder %s30, 0
      %p120 = por %p118, %p119
      %s122 = sadd.s32 %s121, 1
      %p125 = scmp.eq.s32.totalorder %s24, 1
      %p126 = scmp.ne.s32.totalorder %s121, %s123
      %p127 = scmp.eq.s32.totalorder %s24, 0
      %p128 = por %p126, %p127
      %p129 = scmp.ne.s32.totalorder %s121, %s123
      %p130 = scmp.eq.s32.totalorder %s29, 1
      %p131 = por %p129, %p130
      %p132 = scmp.ne.s32.totalorder %s123, %s124
      %p133 = scmp.eq.s32.totalorder %s29, 0
      %p134 = por %p132, %p133
      %p135 = scmp.ne.s32.totalorder %s123, %s124
      %p136 = scmp.eq.s32.totalorder %s30, 1
      %p137 = por %p135, %p136
      %p139 = scmp.ne.s32.totalorder %s124, %s138
      %p140 = scmp.eq.s32.totalorder %s30, 0
      %p141 = por %p139, %p140
      %s143 = sadd.s32 %s142, 1
      %p146 = scmp.eq.s32.totalorder %s24, 1
      %p147 = scmp.ne.s32.totalorder %s142, %s144
      %p148 = scmp.eq.s32.totalorder %s24, 0
      %p149 = por %p147, %p148
      %p150 = scmp.ne.s32.totalorder %s142, %s144
      %p151 = scmp.eq.s32.totalorder %s29, 1
      %p152 = por %p150, %p151
      %p153 = scmp.ne.s32.totalorder %s144, %s145
      %p154 = scmp.eq.s32.totalorder %s29, 0
      %p155 = por %p153, %p154
      %p156 = scmp.ne.s32.totalorder %s144, %s145
      %p157 = scmp.eq.s32.totalorder %s30, 1
      %p158 = por %p156, %p157
      %p160 = scmp.ne.s32.totalorder %s145, %s159
      %p161 = scmp.eq.s32.totalorder %s30, 0
      %p162 = por %p160, %p161
      %s164 = sadd.s32 %s163, 1
      %p167 = scmp.eq.s32.totalorder %s24, 1
      %p168 = scmp.ne.s32.totalorder %s163, %s165
      %p169 = scmp.eq.s32.totalorder %s24, 0
      %p170 = por %p168, %p169
      %p171 = scmp.ne.s32.totalorder %s163, %s165
      %p172 = scmp.eq.s32.totalorder %s29, 1
      %p173 = por %p171, %p172
      %p174 = scmp.ne.s32.totalorder %s165, %s166
      %p175 = scmp.eq.s32.totalorder %s29, 0
      %p176 = por %p174, %p175
      %p177 = scmp.ne.s32.totalorder %s165, %s166
      %p178 = scmp.eq.s32.totalorder %s30, 1
      %p179 = por %p177, %p178
      %p181 = scmp.ne.s32.totalorder %s166, %s180
      %p182 = scmp.eq.s32.totalorder %s30, 0
      %p183 = por %p181, %p182
      %s185 = sadd.s32 %s184, 1
      %p188 = scmp.eq.s32.totalorder %s24, 1
      %p189 = scmp.ne.s32.totalorder %s184, %s186
      %p190 = scmp.eq.s32.totalorder %s24, 0
      %p191 = por %p189, %p190
      %p192 = scmp.ne.s32.totalorder %s184, %s186
      %p193 = scmp.eq.s32.totalorder %s29, 1
      %p194 = por %p192, %p193
      %p195 = scmp.ne.s32.totalorder %s186, %s187
      %p196 = scmp.eq.s32.totalorder %s29, 0
      %p197 = por %p195, %p196
      %p198 = scmp.ne.s32.totalorder %s186, %s187
      %p199 = scmp.eq.s32.totalorder %s30, 1
      %p200 = por %p198, %p199
      %p202 = scmp.ne.s32.totalorder %s187, %s201
      %p203 = scmp.eq.s32.totalorder %s30, 0
      %p204 = por %p202, %p203
      %s206 = sadd.s32 %s205, 1
      %p209 = scmp.eq.s32.totalorder %s24, 1
      %p210 = scmp.ne.s32.totalorder %s205, %s207
      %p211 = scmp.eq.s32.totalorder %s24, 0
      %p212 = por %p210, %p211
      %p213 = scmp.ne.s32.totalorder %s205, %s207
      %p214 = scmp.eq.s32.totalorder %s29, 1
      %p215 = por %p213, %p214
      %p216 = scmp.ne.s32.totalorder %s207, %s208
      %p217 = scmp.eq.s32.totalorder %s29, 0
      %p218 = por %p216, %p217
      %p219 = scmp.ne.s32.totalorder %s207, %s208
      %p220 = scmp.eq.s32.totalorder %s30, 1
      %p221 = por %p219, %p220
      %p223 = scmp.ne.s32.totalorder %s208, %s222
      %p224 = scmp.eq.s32.totalorder %s30, 0
      %p225 = por %p223, %p224
      %s226 = ssub.s32 %s31, %s43
      %p227 = scmp.eq.s32.totalorder %s226, 0
      %s229 = sadd.s32 %s228, 1
      %s230 = scalar_select %p227, %s228, %s229
      %p233 = pneg %p227
      %p234 = scmp.eq.s32.totalorder %s24, 1
      %p235 = por %p233, %p234
      %p236 = scmp.ne.s32.totalorder %s228, %s231
      %p237 = scmp.eq.s32.totalorder %s24, 0
      %p238 = por %p236, %p237
      %p239 = scmp.ne.s32.totalorder %s228, %s231
      %p240 = scmp.eq.s32.totalorder %s29, 1
      %p241 = por %p239, %p240
      %p242 = scmp.ne.s32.totalorder %s231, %s232
      %p243 = scmp.eq.s32.totalorder %s29, 0
      %p244 = por %p242, %p243
      %p245 = scmp.ne.s32.totalorder %s231, %s232
      %p246 = scmp.eq.s32.totalorder %s30, 1
      %p247 = por %p245, %p246
      %p249 = scmp.ne.s32.totalorder %s232, %s248
      %p250 = scmp.eq.s32.totalorder %s30, 0
      %p251 = por %p249, %p250
      %p252 = scmp.le.s32.totalorder 1, %s24
      %p253 = scmp.lt.s32.totalorder %s24, 3
      %p254 = pnand %p252, %p253
      %p255 = pneg %p254
      // Predicated region
      $region9: #{tpu_custom_call.1} parent=5 // pred_check
        _
      $region10: #{tpu_custom_call.1} parent=5 // pred_check_branch
        %257 = sbr.rel (%p254) target = $region12
      $region11: #{tpu_custom_call.1} parent=5 // pred_region
        %s258 = ssub.s32 %s24, 1
        // Predicated region
        $region13: #{tpu_custom_call.1} parent=11 // pred_check
          %p259 = pneg %p113
        $region14: #{tpu_custom_call.1} parent=11 // pred_check_branch
          %261 = sbr.rel (%p259) target = $region16
        $region15: #{tpu_custom_call.1} parent=11 // pred_region
          %263 = vsyncadd [#allocation9], 0
          %s264 = sshll.u32 %s2, 4
          %s265 = int_to_ptr.hbm [resolvable:$true] %s264
          %s266 = sshll.u32 [#allocation10], 4
          %s267 = int_to_ptr.vmem [resolvable:$true] %s266
          %272 = dma.hbm_to_vmem [thread:$0]  %s265, 256, %s267, [#allocation9], 128, 128, 8
        $region16: #{tpu_custom_call.1} parent=11 // pred_fallthru
          _
        // Predicated region
        $region17: #{tpu_custom_call.1} parent=11 // pred_check
          %p273 = pneg %p134
        $region18: #{tpu_custom_call.1} parent=11 // pred_check_branch
          %275 = sbr.rel (%p273) target = $region20
        $region19: #{tpu_custom_call.1} parent=11 // pred_region
          %277 = vsyncadd [#allocation12], 0
          %s278 = sshll.u32 %s3, 4
          %s279 = int_to_ptr.hbm [resolvable:$true] %s278
          %s280 = sshll.u32 [#allocation11], 4
          %s281 = int_to_ptr.vmem [resolvable:$true] %s280
          %286 = dma.hbm_to_vmem [thread:$0]  %s279, 256, %s281, [#allocation12], 128, 128, 8
        $region20: #{tpu_custom_call.1} parent=11 // pred_fallthru
          _
        // Predicated region
        $region21: #{tpu_custom_call.1} parent=11 // pred_check
          %p287 = pneg %p155
        $region22: #{tpu_custom_call.1} parent=11 // pred_check_branch
          %289 = sbr.rel (%p287) target = $region24
        $region23: #{tpu_custom_call.1} parent=11 // pred_region
          _
        $region24: #{tpu_custom_call.1} parent=11 // pred_fallthru
          _
        // Predicated region
        $region25: #{tpu_custom_call.1} parent=11 // pred_check
          %p290 = pneg %p176
        $region26: #{tpu_custom_call.1} parent=11 // pred_check_branch
          %292 = sbr.rel (%p290) target = $region28
        $region27: #{tpu_custom_call.1} parent=11 // pred_region
          %294 = vsyncadd [#allocation12], 0
          %s295 = sshll.u32 %s5, 4
          %s296 = int_to_ptr.hbm [resolvable:$true] %s295
          %s297 = sshll.u32 [#allocation13], 4
          %s298 = int_to_ptr.vmem [resolvable:$true] %s297
          %303 = dma.hbm_to_vmem [thread:$0]  %s296, 2048, %s298, [#allocation12], 128, 128, 8
        $region28: #{tpu_custom_call.1} parent=11 // pred_fallthru
          _
        // Predicated region
        $region29: #{tpu_custom_call.1} parent=11 // pred_check
          %p304 = pneg %p197
        $region30: #{tpu_custom_call.1} parent=11 // pred_check_branch
          %306 = sbr.rel (%p304) target = $region32
        $region31: #{tpu_custom_call.1} parent=11 // pred_region
          _
        $region32: #{tpu_custom_call.1} parent=11 // pred_fallthru
          _
        // Predicated region
        $region33: #{tpu_custom_call.1} parent=11 // pred_check
          %p307 = pneg %p218
        $region34: #{tpu_custom_call.1} parent=11 // pred_check_branch
          %309 = sbr.rel (%p307) target = $region36
        $region35: #{tpu_custom_call.1} parent=11 // pred_region
          _
        $region36: #{tpu_custom_call.1} parent=11 // pred_fallthru
          _
      $region12: #{tpu_custom_call.1} parent=5 // pred_fallthru
        _
      %p310 = scmp.lt.s32.totalorder %s24, 2
      // Predicated region
      $region37: #{tpu_custom_call.1} parent=5 // pred_check
        %p311 = pneg %p310
      $region38: #{tpu_custom_call.1} parent=5 // pred_check_branch
        %313 = sbr.rel (%p311) target = $region40
      $region39: #{tpu_custom_call.1} parent=5 // pred_region
        // Predicated region
        $region41: #{tpu_custom_call.1} parent=39 // pred_check
          %p314 = pneg %p58
        $region42: #{tpu_custom_call.1} parent=39 // pred_check_branch
          %316 = sbr.rel (%p314) target = $region44
        $region43: #{tpu_custom_call.1} parent=39 // pred_region
          %s317 = sand.u32 %s48, 1
          %s318 = scalar_lea.sflag [#allocation6], %s317
          %s319 = sand.u32 %s48, 1
          %s320 = smul.addr %s319, 8
          %s321 = scalar_lea.vmem [#allocation5], %s320
          %s322 = sadd.s32 %s31, %s32
          %324 = vsyncadd %s318, 0
          %s325 = smul.addr %s322, 8
          %s326 = scalar_lea.hbm %s0, %s325
          %s328 = sshll.u32 %s326, 4
          %s329 = int_to_ptr.hbm [resolvable:$true] %s328
          %s330 = sshll.u32 %s321, 4
          %s331 = int_to_ptr.vmem [resolvable:$true] %s330
          %333 = dma.hbm_to_vmem [thread:$0]  %s329, 128, %s331, %s318
        $region44: #{tpu_custom_call.1} parent=39 // pred_fallthru
          _
        // Predicated region
        $region45: #{tpu_custom_call.1} parent=39 // pred_check
          %p334 = pneg %p86
        $region46: #{tpu_custom_call.1} parent=39 // pred_check_branch
          %336 = sbr.rel (%p334) target = $region48
        $region47: #{tpu_custom_call.1} parent=39 // pred_region
          %s337 = sand.u32 %s24, 1
          %s338 = scalar_lea.sflag [#allocation9], %s337
          %s339 = sand.u32 %s76, 1
          %s340 = smul.addr %s339, 16
          %s341 = scalar_lea.vmem [#allocation8], %s340
          %s342 = sadd.s32 %s31, %s32
          %344 = vsyncadd %s338, 0
          %s345 = smul.addr %s342, 8
          %s346 = scalar_lea.hbm %s1, %s345
          %s347 = sshll.u32 %s346, 4
          %s348 = int_to_ptr.hbm [resolvable:$true] %s347
          %s349 = sshll.u32 %s341, 4
          %s350 = int_to_ptr.vmem [resolvable:$true] %s349
          %355 = dma.hbm_to_vmem [thread:$0]  %s348, 256, %s350, %s338, 256, 128, 8
        $region48: #{tpu_custom_call.1} parent=39 // pred_fallthru
          _
      $region40: #{tpu_custom_call.1} parent=5 // pred_fallthru
        _
      %p356 = scmp.le.s32.totalorder 1, %s24
      %p357 = scmp.lt.s32.totalorder %s24, 3
      %p358 = pnand %p356, %p357
      %p359 = pneg %p358
      // Predicated region
      $region49: #{tpu_custom_call.1} parent=5 // pred_check
        _
      $region50: #{tpu_custom_call.1} parent=5 // pred_check_branch
        %361 = sbr.rel (%p358) target = $region52
      $region51: #{tpu_custom_call.1} parent=5 // pred_region
        %s362 = ssub.s32 %s24, 1
        %s363 = sand.u32 %s51, 1
        %s364 = scalar_lea.sflag [#allocation6], %s363
        %s365 = sand.u32 %s51, 1
        %s366 = smul.addr %s365, 8
        %s367 = scalar_lea.vmem [#allocation5], %s366
        // Predicated region
        $region53: #{tpu_custom_call.1} parent=51 // pred_check
          %p368 = pneg %p64
        $region54: #{tpu_custom_call.1} parent=51 // pred_check_branch
          %370 = sbr.rel (%p368) target = $region56
        $region55: #{tpu_custom_call.1} parent=51 // pred_region
          %372 = dma.done %s364, 128
        $region56: #{tpu_custom_call.1} parent=51 // pred_fallthru
          _
        %s373 = sand.u32 %s29, 1
        %s374 = scalar_lea.sflag [#allocation9], %s373
        %s375 = sand.u32 %s79, 1
        %s376 = smul.addr %s375, 16
        %s377 = scalar_lea.vmem [#allocation8], %s376
        // Predicated region
        $region57: #{tpu_custom_call.1} parent=51 // pred_check
          %p378 = pneg %p92
        $region58: #{tpu_custom_call.1} parent=51 // pred_check_branch
          %380 = sbr.rel (%p378) target = $region60
        $region59: #{tpu_custom_call.1} parent=51 // pred_region
          %382 = dma.done %s374, 256
        $region60: #{tpu_custom_call.1} parent=51 // pred_fallthru
          _
        // Predicated region
        $region61: #{tpu_custom_call.1} parent=51 // pred_check
          %p383 = pneg %p113
        $region62: #{tpu_custom_call.1} parent=51 // pred_check_branch
          %385 = sbr.rel (%p383) target = $region64
        $region63: #{tpu_custom_call.1} parent=51 // pred_region
          %387 = dma.done [#allocation9], 256
        $region64: #{tpu_custom_call.1} parent=51 // pred_fallthru
          _
        // Predicated region
        $region65: #{tpu_custom_call.1} parent=51 // pred_check
          %p388 = pneg %p134
        $region66: #{tpu_custom_call.1} parent=51 // pred_check_branch
          %390 = sbr.rel (%p388) target = $region68
        $region67: #{tpu_custom_call.1} parent=51 // pred_region
          %392 = dma.done [#allocation12], 256
        $region68: #{tpu_custom_call.1} parent=51 // pred_fallthru
          _
        // Predicated region
        $region69: #{tpu_custom_call.1} parent=51 // pred_check
          %p393 = pneg %p176
        $region70: #{tpu_custom_call.1} parent=51 // pred_check_branch
          %395 = sbr.rel (%p393) target = $region72
        $region71: #{tpu_custom_call.1} parent=51 // pred_region
          %397 = dma.done [#allocation12], 2048
        $region72: #{tpu_custom_call.1} parent=51 // pred_fallthru
          _
        %s398 = sand.u32 %s51, 1
        %s399 = scalar_lea.sflag [#allocation6], %s398
        %s400 = sand.u32 %s51, 1
        %s401 = smul.addr %s400, 8
        %s402 = scalar_lea.vmem [#allocation5], %s401
        %p403 = pneg %p64
        %p404 = pneg %p61
        %s405 = sand.u32 %s29, 1
        %s406 = scalar_lea.sflag [#allocation9], %s405
        %s407 = sand.u32 %s79, 1
        %s408 = smul.addr %s407, 16
        %s409 = scalar_lea.vmem [#allocation8], %s408
        %p410 = pneg %p92
        %p411 = pneg %p89
        %p412 = pneg %p113
        %p413 = pneg %p110
        %p414 = pneg %p134
        %p415 = pneg %p131
        %p416 = pneg %p155
        %p417 = pneg %p152
        %p418 = pneg %p176
        %p419 = pneg %p173
        %p420 = pneg %p197
        %p421 = pneg %p194
        %p422 = pneg %p218
        %p423 = pneg %p215
        %p424 = pneg %p244
        %p425 = pneg %p241
        %s426 = sand.u32 %s231, 1
        %s427 = scalar_lea.sflag [#allocation7], %s426
        %s428 = sand.u32 %s231, 1
        %s429 = smul.addr %s428, 8
        %s430 = scalar_lea.vmem [#allocation14], %s429
        %s431 = sadd.s32 %s33, %s34
        %s432 = sadd.s32 %s33, %s34
        %p433 = scmp.eq.s32.totalorder %s34, 0
        // Predicated region
        $region73: #{tpu_custom_call.1} parent=51 // pred_check
          %p434 = pneg %p433
        $region74: #{tpu_custom_call.1} parent=51 // pred_check_branch
          %436 = sbr.rel (%p434) target = $region76
        $region75: #{tpu_custom_call.1} parent=51 // pred_region
          %vm437 = vcmask 0
          %438 = vst.msk [vmem:[#allocation2] sm:$0x1] %vm437, 0.0
          %439 = vst.msk [vmem:[#allocation3] sm:$0x1] %vm437, -1e+30
          %440 = vst.msk [vmem:[#allocation4] sm:$0x1] %vm437, 0.0
        $region76: #{tpu_custom_call.1} parent=51 // pred_fallthru
          _
        %v441 = vld [vmem:[%s367] sm:$0xff]
        %v442 = vld [vmem:[%s377] sm:$0xff]
        %v443 = vld [vmem:[%s377 + $0x8] sm:$0xff]
        %v444 = vld [vmem:[#allocation10] sm:$0xff]
        %v445 = vld [vmem:[#allocation10 + $0x8] sm:$0xff]
        %v446 = vld [vmem:[#allocation11] sm:$0xff]
        %v447 = vld [vmem:[#allocation11 + $0x8] sm:$0xff]
        %v448 = vld [vmem:[#allocation13] sm:$0xff]
        %v449 = vld [vmem:[#allocation13 + $0x8] sm:$0xff]
        %v450 = vld [vmem:[#allocation13 + $0x10] sm:$0xff]
        %v451 = vld [vmem:[#allocation13 + $0x18] sm:$0xff]
        %v452 = vld [vmem:[#allocation13 + $0x20] sm:$0xff]
        %v453 = vld [vmem:[#allocation13 + $0x28] sm:$0xff]
        %v454 = vld [vmem:[#allocation13 + $0x30] sm:$0xff]
        %v455 = vld [vmem:[#allocation13 + $0x38] sm:$0xff]
        %v456 = vld [vmem:[#allocation13 + $0x40] sm:$0xff]
        %v457 = vld [vmem:[#allocation13 + $0x48] sm:$0xff]
        %v458 = vld [vmem:[#allocation13 + $0x50] sm:$0xff]
        %v459 = vld [vmem:[#allocation13 + $0x58] sm:$0xff]
        %v460 = vld [vmem:[#allocation13 + $0x60] sm:$0xff]
        %v461 = vld [vmem:[#allocation13 + $0x68] sm:$0xff]
        %v462 = vld [vmem:[#allocation13 + $0x70] sm:$0xff]
        %v463 = vld [vmem:[#allocation13 + $0x78] sm:$0xff]
        %v464 = vld [vmem:[%s4] sm:$0x1]
        %v465 = vld [vmem:[%s6] sm:$0x1]
        %v466 = vld [vmem:[%s7] sm:$0x1]
        %vm467 = vcmask 130048
        %v469 = vsel %vm467, %v441, 0
        %471 = vmatpush.msra.mxu0 0.0
        %472 = vmatpush.msra.mxu0 0.0
        %473 = vmatpush.msra.mxu0 0.0
        %474 = vmatpush.msra.mxu0 0.0
        %475 = vmatpush.msra.mxu0 0.0
        %476 = vmatpush.msra.mxu0 0.0
        %477 = vmatpush.msra.mxu0 0.0
        %478 = vmatpush.msra.mxu0 0.0
        %479 = vmatpush.msra.mxu0 0.0
        %480 = vmatpush.msra.mxu0 0.0
        %481 = vmatpush.msra.mxu0 0.0
        %482 = vmatpush.msra.mxu0 0.0
        %483 = vmatpush.msra.mxu0 0.0
        %484 = vmatpush.msra.mxu0 0.0
        %485 = vmatpush.msra.mxu0 %v445
        %486 = vmatpush.msra.mxu0 %v444
        %487 = vmatmul.f32.gmra.mxu0 %v469
        %v488 = vpop.f32.mrf.mxu0
        %v489 = vadd.f32 0.0, %v488
        %490 = vdwg.mxu0
        %v492 = vsel %vm467, %v442, 0
        %v495 = vsel %vm467, %v443, 0
        %497 = vmatpush.msra.mxu0 0.0
        %498 = vmatpush.msra.mxu0 0.0
        %499 = vmatpush.msra.mxu0 0.0
        %500 = vmatpush.msra.mxu0 0.0
        %501 = vmatpush.msra.mxu0 0.0
        %502 = vmatpush.msra.mxu0 0.0
        %503 = vmatpush.msra.mxu0 0.0
        %504 = vmatpush.msra.mxu0 0.0
        %505 = vmatpush.msra.mxu0 0.0
        %506 = vmatpush.msra.mxu0 0.0
        %507 = vmatpush.msra.mxu0 0.0
        %508 = vmatpush.msra.mxu0 0.0
        %509 = vmatpush.msra.mxu0 0.0
        %510 = vmatpush.msra.mxu0 0.0
        %511 = vmatpush.msra.mxu0 %v447
        %512 = vmatpush.msra.mxu0 %v446
        %513 = vmatmul.f32.gmra.mxu0 %v492
        %v514 = vpop.f32.mrf.mxu0
        %v515 = vadd.f32 0.0, %v514
        %516 = vmatmul.f32.gmra.mxu0 %v495
        %v517 = vpop.f32.mrf.mxu0
        %v518 = vadd.f32 0.0, %v517
        %519 = vdwg.mxu0
        %v520 = vadd.f32 %v515, %v489
        %v521 = vadd.f32 %v518, %v489
        %v523 = vperm.slane %v464, 0
        %v525 = vadd.f32 %v520, %v523
        %v526 = vadd.f32 %v521, %v523
        %v527 = vmax.f32 %v525, 0.0
        %v528 = vmax.f32 %v526, 0.0
        %v530 = vperm.slane %v465, 0
        %532 = vmatpush.msra.mxu0 %v463
        %533 = vmatpush.msra.mxu0 %v462
        %534 = vmatpush.msra.mxu0 %v461
        %535 = vmatpush.msra.mxu0 %v460
        %536 = vmatpush.msra.mxu0 %v459
        %537 = vmatpush.msra.mxu0 %v458
        %538 = vmatpush.msra.mxu0 %v457
        %539 = vmatpush.msra.mxu0 %v456
        %540 = vmatpush.msra.mxu0 %v455
        %541 = vmatpush.msra.mxu0 %v454
        %542 = vmatpush.msra.mxu0 %v453
        %543 = vmatpush.msra.mxu0 %v452
        %544 = vmatpush.msra.mxu0 %v451
        %545 = vmatpush.msra.mxu0 %v450
        %546 = vmatpush.msra.mxu0 %v449
        %547 = vmatpush.msra.mxu0 %v448
        %548 = vmatmul.f32.gmra.mxu0 %v527
        %v549 = vpop.f32.mrf.mxu0
        %v550 = vadd.f32 %v530, %v549
        %551 = vmatmul.f32.gmra.mxu0 %v528
        %v552 = vpop.f32.mrf.mxu0
        %v553 = vadd.f32 %v530, %v552
        %554 = vdwg.mxu0
        %v555 = vmax.f32 %v550, 0.0
        %v556 = vmax.f32 %v553, 0.0
        %s557 = sadd.s32 %s33, %s34
        %s558 = smul.u32 %s557, 8
        %v559 = vlaneseq
        %v560 = vshrl.u32 %v559, 7
        %v561 = vstv %s558
        %v562 = vadd.s32 %v561, %v560
        %vm563 = vcmp.lt.s32.totalorder %v562, 8
        %v564 = vsel %vm563, 1, 0
        %vm565 = vcmp.eq.s32.totalorder %v564, 1
        %v566 = vsel %vm565, %v555, 0.0
        %v567 = vld [vmem:[#allocation2] sm:$0x1]
        %v568 = vrot.slane %v566, 4
        %v569 = vadd.f32 %v566, %v568
        %v570 = vrot.slane %v569, 2
        %v571 = vadd.f32 %v569, %v570
        %v572 = vrot.slane %v571, 1
        %v573 = vadd.f32 %v571, %v572
        %v574 = vmul.f32 %v573, %v466
        %vm575 = vcmask 1040384
        %v576 = vsel %vm575, %v574, 0.0
        %577 = vadd.xlane.f32.xlu0 %v576
        %v578 = vpop.xlane.xlu0 %577
        %v579 = vadd.f32 %v567, %v578
        %vm580 = vcmask 0
        %581 = vst.msk [vmem:[#allocation2] sm:$0x1] %vm580, %v579
        %v583 = vperm.slane %v466, 0
        %v585 = vmul.f32 %v556, %v583
        %586 = vadd.xlane.f32.xlu0 %v585
        %v587 = vpop.xlane.xlu0 %586
        %v588 = vsel %vm563, %v587, -1e+30
        %v589 = vrot.slane %v588, 4
        %v590 = vmax.f32 %v588, %v589
        %v591 = vrot.slane %v590, 2
        %v592 = vmax.f32 %v590, %v591
        %v593 = vrot.slane %v592, 1
        %v594 = vmax.f32 %v592, %v593
        %s595 = vtos %v594
        %v596 = vstv %s595
        %v597 = vld [vmem:[#allocation3] sm:$0x1]
        %v598 = vmax.f32 %v597, %v596
        %v599 = vld [vmem:[#allocation4] sm:$0x1]
        %v600 = vsub.f32 %v597, %v598
        %v601 = vmul.f32 %v600, 1.442695
        %v602 = vpow.pop %v601
        %v603 = vmul.f32 %v599, %v602
        %v605 = vperm.slane %v598, 0
        %v607 = vsub.f32 %v588, %v605
        %v608 = vmul.f32 %v607, 1.442695
        %v609 = vpow.pop %v608
        %vm610 = vcmask 7168
        %v611 = vsel %vm610, %v609, 0.0
        %612 = vadd.xlane.f32.xlu0 %v611
        %v613 = vpop.xlane.xlu0 %612
        %v614 = vrot.slane %v613, 4
        %v615 = vadd.f32 %v613, %v614
        %v616 = vrot.slane %v615, 2
        %v617 = vadd.f32 %v615, %v616
        %v618 = vrot.slane %v617, 1
        %v619 = vadd.f32 %v617, %v618
        %s620 = vtos %v619
        %v621 = vstv %s620
        %v622 = vadd.f32 %v603, %v621
        %623 = vst.msk [vmem:[#allocation4] sm:$0x1] %vm580, %v622
        %624 = vst.msk [vmem:[#allocation3] sm:$0x1] %vm580, %v598
        // Predicated region
        $region77: #{tpu_custom_call.1} parent=51 // pred_check
          %p625 = pneg %p433
        $region78: #{tpu_custom_call.1} parent=51 // pred_check_branch
          %627 = sbr.rel (%p625) target = $region80
        $region79: #{tpu_custom_call.1} parent=51 // pred_region
          %v628 = vlaneseq
          %v629 = vand.u32 %v628, 127
          %vm630 = vcmp.eq.s32.totalorder %v629, 0
          %v631 = vld [vmem:[#allocation2] sm:$0x1]
          %vm632 = vcmp.eq.s32.totalorder %v629, 1
          %v633 = vld [vmem:[#allocation3] sm:$0x1]
          %vm634 = vcmp.eq.s32.totalorder %v629, 2
          %v635 = vld [vmem:[#allocation4] sm:$0x1]
          %v637 = vperm.slane %v635, 0
          %638 = vset.pattern.permute.xlu0 0
          %639 = vperm.xlu0 %638, %v637
          %v640 = vpop.permute.xlu0 %639
          %v642 = vsel %vm634, %v640, 0.0
          %v644 = vperm.slane %v633, 0
          %645 = vset.pattern.permute.xlu0 0
          %646 = vperm.xlu0 %645, %v644
          %v647 = vpop.permute.xlu0 %646
          %v649 = vsel %vm632, %v647, %v642
          %v651 = vperm.slane %v631, 0
          %652 = vset.pattern.permute.xlu0 0
          %653 = vperm.xlu0 %652, %v651
          %v654 = vpop.permute.xlu0 %653
          %v656 = vsel %vm630, %v654, %v649
          %657 = vst [vmem:[%s430] sm:$0xff] %v656
        $region80: #{tpu_custom_call.1} parent=51 // pred_fallthru
          _
        %s658 = sand.u32 %s231, 1
        %s659 = scalar_lea.sflag [#allocation7], %s658
        %s660 = sand.u32 %s231, 1
        %s661 = smul.addr %s660, 8
        %s662 = scalar_lea.vmem [#allocation14], %s661
        // Predicated region
        $region81: #{tpu_custom_call.1} parent=51 // pred_check
          %p663 = pneg %p241
        $region82: #{tpu_custom_call.1} parent=51 // pred_check_branch
          %665 = sbr.rel (%p663) target = $region84
        $region83: #{tpu_custom_call.1} parent=51 // pred_region
          %667 = vsyncadd %s659, 0
          %s668 = smul.addr %s33, 8
          %s669 = scalar_lea.hbm %s8, %s668
          %s671 = sshll.u32 %s662, 4
          %s672 = int_to_ptr.vmem [resolvable:$true] %s671
          %s673 = sshll.u32 %s669, 4
          %s674 = int_to_ptr.hbm [resolvable:$true] %s673
          %676 = dma.vmem_to_hbm [thread:$0]  %s672, 128, %s674, %s659
        $region84: #{tpu_custom_call.1} parent=51 // pred_fallthru
          _
      $region52: #{tpu_custom_call.1} parent=5 // pred_fallthru
        _
      %p677 = scmp.le.s32.totalorder 2, %s24
      // Predicated region
      $region85: #{tpu_custom_call.1} parent=5 // pred_check
        %p678 = pneg %p677
      $region86: #{tpu_custom_call.1} parent=5 // pred_check_branch
        %680 = sbr.rel (%p678) target = $region88
      $region87: #{tpu_custom_call.1} parent=5 // pred_region
        %s681 = ssub.s32 %s24, 2
        // Predicated region
        $region89: #{tpu_custom_call.1} parent=87 // pred_check
          %p682 = pneg %p247
        $region90: #{tpu_custom_call.1} parent=87 // pred_check_branch
          %684 = sbr.rel (%p682) target = $region92
        $region91: #{tpu_custom_call.1} parent=87 // pred_region
          %s685 = sand.u32 %s232, 1
          %s686 = scalar_lea.sflag [#allocation7], %s685
          %s687 = sand.u32 %s232, 1
          %s688 = smul.addr %s687, 8
          %s689 = scalar_lea.vmem [#allocation14], %s688
          %691 = dma.done %s686, 128
        $region92: #{tpu_custom_call.1} parent=87 // pred_fallthru
          _
      $region88: #{tpu_custom_call.1} parent=5 // pred_fallthru
        _
    $region6: #{tpu_custom_call.1} parent=1 // loop_footer
      %s28 = sadd.s32 1, %s24
    $region7: #{tpu_custom_call.1} parent=1 // loop_footer_branch
      %23 = sbr.rel target = $region3
    $region8: #{tpu_custom_call.1} parent=1 // loop_exit
      _
    %692 = vsyncpa [#allocation6], 1
    %s693 = scalar_lea.sflag [#allocation6], 1
    %694 = vsyncpa %s693, 1
    %695 = vsyncpa [#allocation9], 1
    %s696 = scalar_lea.sflag [#allocation9], 1
    %697 = vsyncpa %s696, 1
    %698 = vsyncpa [#allocation12], 1
    %699 = vsyncpa [#allocation7], 1
    %s700 = scalar_lea.sflag [#allocation7], 1
    %701 = vsyncpa %s700, 1

</llo_original>
